<compile_context>
chip_gen: v7x
topology: tpu7x:2x2x1
jax: 0.10.0
libtpu: 0.0.40
codegen_flags: <defaults>
</compile_context>

<pallas_src>
import functools

import jax
import jax.numpy as jnp
from jax.experimental import pallas as pl
from jax.experimental.pallas import tpu as pltpu

_LANE = 128
_SUB = 8                                # f32 sublane tile / accumulator rows
_TARGET_BLOCK_BYTES = 4 * 1024 * 1024   # per-input per-step DMA block (~4 MiB)
_CHUNK_ROWS = 512                       # inner-loop rows (bounds f32 temps to 256 KiB)


def _cdiv(a, b):
    return (a + b - 1) // b


def _round_up(a, b):
    return _cdiv(a, b) * b


def _mse_partial_kernel(x_ref, y_ref, o_ref, *, n_rows, tile_r, chunk_r,
                        steps_per_split, any_masking):
    # x_ref, y_ref : (tile_r, 128) tiles in VMEM (native dtype)
    # o_ref        : (8, 128) f32 per-split partial-sum block (resident accumulator)
    c = pl.program_id(0)                 # split (TensorCore) index  -- "parallel"
    r = pl.program_id(1)                 # step within split         -- "arbitrary"
    b = c * steps_per_split + r          # intended (unclamped) row-block index

    @pl.when(r == 0)
    def _():
        o_ref[...] = jnp.zeros_like(o_ref)

    num_chunks = tile_r // chunk_r

    def tile_partial(masked):
        def body(i, acc):
            off = pl.multiple_of(i * chunk_r, chunk_r)
            xs = x_ref[pl.ds(off, chunk_r), :].astype(jnp.float32)
            ys = y_ref[pl.ds(off, chunk_r), :].astype(jnp.float32)
            d = xs - ys
            dsq = d * d
            if masked:
                # Mask rows beyond the real data (partial last block, or a
                # duplicated clamped block) -- Pallas does not zero OOB rows.
                row = (b * tile_r + off
                       + jax.lax.broadcasted_iota(jnp.int32, (chunk_r, _LANE), 0))
                dsq = jnp.where(row < n_rows, dsq, 0.0)
            # Fold (chunk_r, 128) -> (8, 128): pure vreg adds on the VPU.
            return acc + dsq.reshape(chunk_r // _SUB, _SUB, _LANE).sum(axis=0)

        return jax.lax.fori_loop(0, num_chunks, body,
                                 jnp.zeros((_SUB, _LANE), jnp.float32))

    if any_masking:
        block_end = (b + 1) * tile_r

        @pl.when(block_end <= n_rows)           # steady state: unmasked
        def _():
            o_ref[...] += tile_partial(masked=False)

        @pl.when(block_end > n_rows)            # only the ragged/duplicated blocks
        def _():
            o_ref[...] += tile_partial(masked=True)
    else:
        o_ref[...] += tile_partial(masked=False)


def mse_loss(x, y):
    assert x.shape == y.shape, (x.shape, y.shape)
    n = x.size
    xf = x.reshape(-1)
    yf = y.reshape(-1)

    rows = n // _LANE
    rem = n - rows * _LANE

    # <128-element ragged tail: tiny XLA reduction instead of a full-array pad.
    # TODO(synk): a fully zero-copy ragged path would need a manual-DMA 1-D kernel;
    #             for rem != 0 the prefix slice below still costs one copy.
    tail = jnp.float32(0.0)
    if rem:
        tail = jnp.sum((xf[rows * _LANE:].astype(jnp.float32)
                        - yf[rows * _LANE:].astype(jnp.float32)) ** 2)

    if rows == 0:   # degenerate n < 128: nothing for the kernel to do
        return tail * jnp.float32(1.0 / n)

    xb = xf[: rows * _LANE] if rem else xf
    yb = yf[: rows * _LANE] if rem else yf
    x2 = xb.reshape(rows, _LANE)
    y2 = yb.reshape(rows, _LANE)

    itemsize = jnp.dtype(x.dtype).itemsize
    # Packed sub-32-bit dtypes need a larger minimum sublane tile (bf16:16, int8:32).
    sub_mult = max(_SUB, 32 // itemsize)

    # Byte-targeted row tile (~4 MiB per input per step), clamped for small inputs
    # while staying a multiple of the chunk / packed tile.
    tile_r_target = max(sub_mult, _TARGET_BLOCK_BYTES // (_LANE * itemsize))
    if rows <= _CHUNK_ROWS:
        chunk_r = _round_up(rows, sub_mult)
        tile_r = chunk_r
    else:
        chunk_r = _CHUNK_ROWS
        tile_r = min(tile_r_target, _round_up(rows, chunk_r))

    steps = _cdiv(rows, tile_r)
    # Split the row range across the two v7x TensorCores ("parallel" leading axis);
    # near-zero cost on single-core v5e/v6e.
    num_splits = 2 if steps >= 2 else 1
    steps_per_split = _cdiv(steps, num_splits)
    any_masking = (rows % tile_r != 0) or (num_splits * steps_per_split != steps)

    def in_index(c, r):
        # Clamp so duplicated trailing grid points (odd step counts) re-read the
        # last valid block; their contribution is fully masked to zero in-kernel.
        return (jnp.minimum(c * steps_per_split + r, steps - 1), 0)

    kernel = functools.partial(
        _mse_partial_kernel,
        n_rows=rows, tile_r=tile_r, chunk_r=chunk_r,
        steps_per_split=steps_per_split, any_masking=any_masking)

    partials = pl.pallas_call(
        kernel,
        out_shape=jax.ShapeDtypeStruct((num_splits, _SUB, _LANE), jnp.float32),
        grid_spec=pltpu.PrefetchScalarGridSpec(
            num_scalar_prefetch=0,
            grid=(num_splits, steps_per_split),
            in_specs=[
                pl.BlockSpec((tile_r, _LANE), in_index),   # x tiles
                pl.BlockSpec((tile_r, _LANE), in_index),   # y tiles
            ],
            # One (8,128) f32 partial-sum block per split; resident across the
            # inner reduction axis (index map ignores r).
            out_specs=pl.BlockSpec((None, _SUB, _LANE), lambda c, r: (c, 0, 0)),
        ),
        compiler_params=pltpu.CompilerParams(
            dimension_semantics=("parallel", "arbitrary"),
            vmem_limit_bytes=32 * 1024 * 1024,
        ),
        cost_estimate=pl.CostEstimate(
            flops=3 * n,
            transcendentals=0,
            bytes_accessed=2 * n * itemsize + num_splits * _SUB * _LANE * 4),
    )(x2, y2)

    # Tiny final combine outside the kernel (num_splits * 1024 f32 elements).
    return (jnp.sum(partials) + tail) * jnp.float32(1.0 / n)


if __name__ == "__main__":
    key = jax.random.PRNGKey(0)
    kx, ky = jax.random.split(key)
    # Small NCHW-style inputs consistent with the PyTorch module.
    x = jax.random.normal(kx, (2, 4, 16, 16), dtype=jnp.float32)
    y = jax.random.normal(ky, (2, 4, 16, 16), dtype=jnp.float32)

    loss = mse_loss(x, y)
    jax.block_until_ready(loss)

    ref = jnp.mean((x - y) ** 2)
    assert jnp.allclose(loss, ref, rtol=1e-6, atol=1e-6), (loss, ref)
    print("KERNEL_OK")
</pallas_src>

<mosaic_0001>
module attributes {stable_mosaic.version = 11 : i64} {
  func.func @_mse_partial_kernel(%arg0: i32, %arg1: i32, %arg2: memref<16x128xf32, #tpu.memory_space<vmem>>, %arg3: memref<16x128xf32, #tpu.memory_space<vmem>>, %arg4: memref<1x8x128xf32, #tpu.memory_space<vmem>>) attributes {dimension_semantics = [#tpu.dimension_semantics<parallel>, #tpu.dimension_semantics<arbitrary>], iteration_bounds = array<i64: 1, 1>, scalar_prefetch = 0 : i64, scratch_operands = 0 : i64, tpu.core_type = #tpu.core_type<tc>, window_params = [{transform_indices = @transform_0, window_bounds = array<i64: 16, 128>}, {transform_indices = @transform_1, window_bounds = array<i64: 16, 128>}, {transform_indices = @transform_2, window_bounds = array<i64: 1, 8, 128>}]} {
    %c0_i32 = arith.constant 0 : i32
    %0 = arith.cmpi eq, %arg1, %c0_i32 : i32
    %1 = arith.extui %0 : i1 to i32
    %c0_i32_0 = arith.constant 0 : i32
    %2 = arith.cmpi ne, %1, %c0_i32_0 : i32
    scf.if %2 {
      %cst_10 = arith.constant 0.000000e+00 : f32
      %21 = vector.broadcast %cst_10 : f32 to vector<8x128xf32>
      %c0_11 = arith.constant 0 : index
      %c0_12 = arith.constant 0 : index
      %c0_13 = arith.constant 0 : index
      %22 = vector.load %arg4[%c0_11, %c0_12, %c0_13] : memref<1x8x128xf32, #tpu.memory_space<vmem>>, vector<1x8x128xf32>
      %23 = vector.shape_cast %22 : vector<1x8x128xf32> to vector<8x128xf32>
      %24 = vector.shape_cast %21 : vector<8x128xf32> to vector<1x8x128xf32>
      tpu.vector_store %arg4[%c0_11, %c0_12, %c0_13], %24 {strides = array<i32>} : memref<1x8x128xf32, #tpu.memory_space<vmem>>, vector<1x8x128xf32>,
    } else {
    }
    %c0 = arith.constant 0 : index
    %c0_1 = arith.constant 0 : index
    %c0_2 = arith.constant 0 : index
    %3 = vector.load %arg4[%c0, %c0_1, %c0_2] : memref<1x8x128xf32, #tpu.memory_space<vmem>>, vector<1x8x128xf32>
    %4 = vector.shape_cast %3 : vector<1x8x128xf32> to vector<8x128xf32>
    %cst = arith.constant 0.000000e+00 : f32
    %5 = vector.broadcast %cst : f32 to vector<8x128xf32>
    %c0_i32_3 = arith.constant 0 : i32
    %c16_i32 = arith.constant 16 : i32
    %6 = arith.muli %c0_i32_3, %c16_i32 : i32
    %7 = tpu.assume_multiple %6, 16 : i32
    %8 = arith.index_cast %7 : i32 to index
    %c0_4 = arith.constant 0 : index
    %9 = vector.load %arg2[%8, %c0_4] : memref<16x128xf32, #tpu.memory_space<vmem>>, vector<16x128xf32>
    %10 = arith.index_cast %7 : i32 to index
    %c0_5 = arith.constant 0 : index
    %11 = vector.load %arg3[%10, %c0_5] : memref<16x128xf32, #tpu.memory_space<vmem>>, vector<16x128xf32>
    %12 = arith.subf %9, %11 : vector<16x128xf32>
    %13 = arith.mulf %12, %12 : vector<16x128xf32>
    %14 = vector.shape_cast %13 : vector<16x128xf32> to vector<2x8x128xf32>
    %cst_6 = arith.constant dense<0.000000e+00> : vector<8x128xf32>
    %15 = vector.multi_reduction <add>, %14, %cst_6 [0] : vector<2x8x128xf32> to vector<8x128xf32>
    %16 = arith.addf %5, %15 : vector<8x128xf32>
    %c1_i32 = arith.constant 1 : i32
    %17 = arith.addf %4, %16 : vector<8x128xf32>
    %c0_7 = arith.constant 0 : index
    %c0_8 = arith.constant 0 : index
    %c0_9 = arith.constant 0 : index
    %18 = vector.load %arg4[%c0_7, %c0_8, %c0_9] : memref<1x8x128xf32, #tpu.memory_space<vmem>>, vector<1x8x128xf32>
    %19 = vector.shape_cast %18 : vector<1x8x128xf32> to vector<8x128xf32>
    %20 = vector.shape_cast %17 : vector<8x128xf32> to vector<1x8x128xf32>
    tpu.vector_store %arg4[%c0_7, %c0_8, %c0_9], %20 {strides = array<i32>} : memref<1x8x128xf32, #tpu.memory_space<vmem>>, vector<1x8x128xf32>,
    return
  }
  func.func @transform_0(%arg0: i32, %arg1: i32) -> (i32, i32) {
    %c1_i32 = arith.constant 1 : i32
    %0 = arith.muli %arg0, %c1_i32 : i32
    %1 = arith.addi %0, %arg1 : i32
    %c0_i32 = arith.constant 0 : i32
    %2 = arith.minsi %1, %c0_i32 : i32
    %c0_i32_0 = arith.constant 0 : i32
    %c0_i32_1 = arith.constant 0 : i32
    return %2, %c0_i32_0 : i32, i32
  }
  func.func @transform_1(%arg0: i32, %arg1: i32) -> (i32, i32) {
    %c1_i32 = arith.constant 1 : i32
    %0 = arith.muli %arg0, %c1_i32 : i32
    %1 = arith.addi %0, %arg1 : i32
    %c0_i32 = arith.constant 0 : i32
    %2 = arith.minsi %1, %c0_i32 : i32
    %c0_i32_0 = arith.constant 0 : i32
    %c0_i32_1 = arith.constant 0 : i32
    return %2, %c0_i32_0 : i32, i32
  }
  func.func @transform_2(%arg0: i32, %arg1: i32) -> (i32, i32, i32) {
    %c0_i32 = arith.constant 0 : i32
    %c0_i32_0 = arith.constant 0 : i32
    %c0_i32_1 = arith.constant 0 : i32
    return %arg0, %c0_i32, %c0_i32_0 : i32, i32, i32
  }
}

</mosaic_0001>

<llo_original>
// kernel: tpu_custom_call.1
$region0: #{tpu_custom_call.1}
  #allocation0 [shape = 'u32[]', space=smem, size = 0x4, offset = 0x4, fixed_abs, tag = 'smem constant byte address 0x4 - core index']
  #allocation1 [shape = 'u32[144,128]{1,0:T(1,128)}', space=vmem, size = 0x12000, scoped, tag = 'internal scratch']
  %s0 = inlined_call_operand.hbm [shape: f32[16,128], index: 0, kind: input, shape index: {}]
  %s1 = inlined_call_operand.hbm [shape: f32[16,128], index: 1, kind: input, shape index: {}]
  %s2 = inlined_call_operand.hbm [shape: f32[1,8,128], index: 2, kind: output, shape index: {}]
  %s3 = sld [smem:[#allocation0]]
  $region30: #{tpu_custom_call.1} parent=0
    _
  %s5 = ssub.s32 1, %s3
  %s6 = scalar_select 0, %s5, %s3
  $region1: #{tpu_custom_call.1} parent=0
    #allocation2 [shape = 'u8[8192]{0}', space=vmem, size = 0x2000, scoped, tag = 'input window, operand 0, single buffered']
    #allocation3 [shape = 's32[1]{0}', space=sflag, size = 0x4, scoped, tag = 'scoped memory for tpu_custom_call.1']
    #allocation4 [shape = 's32[1]{0}', space=sflag, size = 0x4, scoped, tag = 'scoped memory for tpu_custom_call.1']
    #allocation5 [shape = 'u8[8192]{0}', space=vmem, size = 0x2000, scoped, tag = 'input window, operand 1, single buffered']
    #allocation6 [shape = 's32[1]{0}', space=sflag, size = 0x4, scoped, tag = 'scoped memory for tpu_custom_call.1']
    #allocation7 [shape = 'u8[4096]{0}', space=vmem, size = 0x1000, scoped, tag = 'output window, operand 0, single buffered']
    %7 = vsyncpa [#allocation3], 0
    %8 = vsyncpa [#allocation6], 0
    %9 = vsyncpa [#allocation4], 0
    // Predicated region
    $region2: #{tpu_custom_call.1} parent=1 // pred_check
      _
    $region3: #{tpu_custom_call.1} parent=1 // pred_check_branch
      %11 = sbr.rel (0) target = $region5
    $region4: #{tpu_custom_call.1} parent=1 // pred_region
      %s12 = sadd.s32 0, 0
      %p13 = scmp.lt.s32.totalorder %s12, 0
      %s14 = scalar_select %p13, %s12, 0
      %s15 = smul.u32 2, %s14
      %s17 = ssub.s32 256, 256
      %18 = vsyncadd [#allocation3], %s17
      %s19 = smul.addr %s15, 128
      %s20 = scalar_lea.hbm %s0, %s19
      %s21 = sshll.u32 [#allocation2], 4
      %s22 = int_to_ptr.vmem [resolvable:$true] %s21
      %27 = dma.hbm_to_vmem [thread:$0]  %s20, 256, %s22, [#allocation3], 128, 128, 8
    $region5: #{tpu_custom_call.1} parent=1 // pred_fallthru
      _
    // Predicated region
    $region6: #{tpu_custom_call.1} parent=1 // pred_check
      _
    $region7: #{tpu_custom_call.1} parent=1 // pred_check_branch
      %29 = sbr.rel (0) target = $region9
    $region8: #{tpu_custom_call.1} parent=1 // pred_region
      %s30 = sadd.s32 0, 0
      %p31 = scmp.lt.s32.totalorder %s30, 0
      %s32 = scalar_select %p31, %s30, 0
      %s33 = smul.u32 2, %s32
      %s35 = ssub.s32 256, 256
      %36 = vsyncadd [#allocation6], %s35
      %s37 = smul.addr %s33, 128
      %s38 = scalar_lea.hbm %s1, %s37
      %s39 = sshll.u32 [#allocation5], 4
      %s40 = int_to_ptr.vmem [resolvable:$true] %s39
      %45 = dma.hbm_to_vmem [thread:$0]  %s38, 256, %s40, [#allocation6], 128, 128, 8
    $region9: #{tpu_custom_call.1} parent=1 // pred_fallthru
      _
    // Predicated region
    $region10: #{tpu_custom_call.1} parent=1 // pred_check
      _
    $region11: #{tpu_custom_call.1} parent=1 // pred_check_branch
      %47 = sbr.rel (0) target = $region13
    $region12: #{tpu_custom_call.1} parent=1 // pred_region
      %48 = dma.done [#allocation3], 256
    $region13: #{tpu_custom_call.1} parent=1 // pred_fallthru
      _
    // Predicated region
    $region14: #{tpu_custom_call.1} parent=1 // pred_check
      _
    $region15: #{tpu_custom_call.1} parent=1 // pred_check_branch
      %50 = sbr.rel (0) target = $region17
    $region16: #{tpu_custom_call.1} parent=1 // pred_region
      %51 = dma.done [#allocation6], 256
    $region17: #{tpu_custom_call.1} parent=1 // pred_fallthru
      _
    %s52 = sadd.s32 0, 0
    %p53 = scmp.lt.s32.totalorder %s52, 0
    %s54 = scalar_select %p53, %s52, 0
    %s55 = smul.u32 2, %s54
    %s56 = sadd.s32 0, 0
    %p57 = scmp.lt.s32.totalorder %s56, 0
    %s58 = scalar_select %p57, %s56, 0
    %s59 = smul.u32 2, %s58
    %p60 = scmp.eq.s32.totalorder 0, 0
    // Predicated region
    $region18: #{tpu_custom_call.1} parent=1 // pred_check
      %p61 = pneg %p60
    $region19: #{tpu_custom_call.1} parent=1 // pred_check_branch
      %63 = sbr.rel (%p61) target = $region21
    $region20: #{tpu_custom_call.1} parent=1 // pred_region
      %64 = vst [vmem:[#allocation7] sm:$0xff] 0.0
    $region21: #{tpu_custom_call.1} parent=1 // pred_fallthru
      _
    %v65 = vld [vmem:[#allocation7] sm:$0xff]
    %v66 = vld [vmem:[#allocation2] sm:$0xff]
    %v67 = vld [vmem:[#allocation2 + $0x8] sm:$0xff]
    %v68 = vld [vmem:[#allocation5] sm:$0xff]
    %v69 = vld [vmem:[#allocation5 + $0x8] sm:$0xff]
    %v70 = vsub.f32 %v66, %v68
    %v71 = vsub.f32 %v67, %v69
    %v72 = vmul.f32 %v70, %v70
    %v73 = vmul.f32 %v71, %v71
    %v74 = vadd.f32 %v72, %v73
    %v75 = vadd.f32 %v74, 0.0
    %v76 = vadd.f32 %v65, %v75
    %77 = vst [vmem:[#allocation7] sm:$0xff] %v76
    // Predicated region
    $region22: #{tpu_custom_call.1} parent=1 // pred_check
      _
    $region23: #{tpu_custom_call.1} parent=1 // pred_check_branch
      %79 = sbr.rel (0) target = $region25
    $region24: #{tpu_custom_call.1} parent=1 // pred_region
      %s81 = ssub.s32 128, 128
      %82 = vsyncadd [#allocation4], %s81
      %s84 = sshll.u32 [#allocation7], 4
      %s85 = int_to_ptr.vmem [resolvable:$true] %s84
      %87 = dma.vmem_to_hbm [thread:$0]  %s85, 128, %s2, [#allocation4]
    $region25: #{tpu_custom_call.1} parent=1 // pred_fallthru
      _
    // Predicated region
    $region26: #{tpu_custom_call.1} parent=1 // pred_check
      _
    $region27: #{tpu_custom_call.1} parent=1 // pred_check_branch
      %89 = sbr.rel (0) target = $region29
    $region28: #{tpu_custom_call.1} parent=1 // pred_region
      %90 = dma.done [#allocation4], 128
    $region29: #{tpu_custom_call.1} parent=1 // pred_fallthru
      _
    %91 = vsyncpa [#allocation3], 1
    %92 = vsyncpa [#allocation6], 1
    %93 = vsyncpa [#allocation4], 1

</llo_original>
